<compile_context>
chip_gen: v7x
topology: tpu7x:2x2x1
jax: 0.10.0
libtpu: 0.0.40
codegen_flags: <defaults>
</compile_context>

<pallas_src>
import jax
import jax.numpy as jnp
from jax.experimental import pallas as pl
from jax.experimental.pallas import tpu as pltpu

INPUT_SIZE = 28 * 28          # 784
NUM_CLASSES = 10
HIDDEN_LAYER = 7              # 2 ** 7 = 128 hidden units
HIDDEN = 2 ** HIDDEN_LAYER    # 128

PADDED_OUT = 128              # lane-dense fc2 output (cols 10..127 are zero padding)


def _round_up(n, m):
    return ((n + m - 1) // m) * m


def _an_kernel(x_ref, w1_ref, b1_ref, w2_ref, b2_ref, o_ref):
    # x arrives f32; cast to bf16 in VMEM (VPU) so HBM only carries 4 B/elt once.
    x = x_ref[...].astype(jnp.bfloat16)
    # fc1: [TB, 784]bf16 @ [784, 128]bf16 -> f32 accumulate (Mosaic pads K internally)
    h = jnp.dot(x, w1_ref[...], preferred_element_type=jnp.float32)
    h = jnp.maximum(h + b1_ref[...], 0.0)                      # bias + ReLU in f32
    # fc2: [TB, 128]bf16 @ [128, 128]bf16 -> f32 (full-width MXU tile, zero-padded cols)
    out = jnp.dot(h.astype(jnp.bfloat16), w2_ref[...],
                  preferred_element_type=jnp.float32)
    o_ref[...] = (out + b2_ref[...]).astype(o_ref.dtype)       # bf16 lane-dense store


def prepare_params(w1, b1, w2, b2):
    """Cast weights to bf16 once and pad fc2 to a lane-dense 128-wide output."""
    in_dim, hidden = w1.shape
    w1p = w1.astype(jnp.bfloat16)                              # [784, 128]
    b1p = b1.reshape(1, hidden).astype(jnp.float32)
    w2p = jnp.zeros((hidden, PADDED_OUT), jnp.bfloat16)
    w2p = w2p.at[:, : w2.shape[1]].set(w2.astype(jnp.bfloat16))
    b2p = jnp.zeros((1, PADDED_OUT), jnp.float32)
    b2p = b2p.at[:, : b2.shape[1]].set(b2.reshape(1, -1).astype(jnp.float32))
    return w1p, b1p, w2p, b2p


def an_forward(x, w1p, b1p, w2p, b2p, *, num_classes=NUM_CLASSES, block_b=1024):
    """x: [B, ...] (flattened to [B, 784]); returns [B, num_classes] f32."""
    batch = x.shape[0]
    x2d = x.reshape(batch, -1)                     # nn.Flatten(); stays f32, no copy/pad
    in_dim = x2d.shape[1]
    assert in_dim == w1p.shape[0]

    # Batch tile: multiple of 8 sublanes; keep >=2 grid steps when the batch allows so
    # the "parallel" axis shards across v7x's two TensorCores.
    tb = min(block_b, _round_up(batch, 8))
    if batch > 16 and pl.cdiv(batch, tb) < 2:
        tb = _round_up(pl.cdiv(batch, 2), 8)
    grid_b = pl.cdiv(batch, tb)                    # remainder tile handled by masking

    # Double-buffered VMEM budget: x tile (f32) + out tile (bf16) + weights/biases.
    vmem_bytes = (2 * (tb * in_dim * 4 + tb * PADDED_OUT * 2)
                  + 2 * 2 * (in_dim * HIDDEN + HIDDEN * PADDED_OUT)
                  + 2 * 4 * (HIDDEN + PADDED_OUT))
    cp = {"dimension_semantics": ("parallel",)}
    if vmem_bytes > 24 * 1024 * 1024:              # only for very large tile sweeps
        cp["vmem_limit_bytes"] = min(vmem_bytes + (8 << 20), 60 << 20)

    out = pl.pallas_call(
        _an_kernel,
        out_shape=jax.ShapeDtypeStruct((batch, PADDED_OUT), jnp.bfloat16),
        grid_spec=pltpu.PrefetchScalarGridSpec(
            num_scalar_prefetch=0,
            grid=(grid_b,),
            in_specs=[
                pl.BlockSpec((tb, in_dim), lambda i: (i, 0)),        # x: tiled on batch
                pl.BlockSpec((in_dim, HIDDEN), lambda i: (0, 0)),    # w1: VMEM-resident
                pl.BlockSpec((1, HIDDEN), lambda i: (0, 0)),         # b1: VMEM-resident
                pl.BlockSpec((HIDDEN, PADDED_OUT), lambda i: (0, 0)),# w2: VMEM-resident
                pl.BlockSpec((1, PADDED_OUT), lambda i: (0, 0)),     # b2: VMEM-resident
            ],
            out_specs=pl.BlockSpec((tb, PADDED_OUT), lambda i: (i, 0)),
        ),
        compiler_params=pltpu.CompilerParams(**cp),
    )(x2d, w1p, b1p, w2p, b2p)

    # Slice the 10 real logits, then cast (tiny) back to f32 for the caller.
    return out[:, :num_classes].astype(jnp.float32)


def init_params(key, input_size, num_classes, hidden_layer):
    """Deterministic init mimicking nn.Linear's default U(-1/sqrt(in), 1/sqrt(in))."""
    hidden = 2 ** hidden_layer
    k1, k2, k3, k4 = jax.random.split(key, 4)
    lim1 = 1.0 / jnp.sqrt(jnp.float32(input_size))
    lim2 = 1.0 / jnp.sqrt(jnp.float32(hidden))
    # stored as [in, out] (transposed from PyTorch [out, in])
    w1 = jax.random.uniform(k1, (input_size, hidden), jnp.float32, -lim1, lim1)
    b1 = jax.random.uniform(k2, (1, hidden), jnp.float32, -lim1, lim1)
    w2 = jax.random.uniform(k3, (hidden, num_classes), jnp.float32, -lim2, lim2)
    b2 = jax.random.uniform(k4, (1, num_classes), jnp.float32, -lim2, lim2)
    return w1, b1, w2, b2


if __name__ == "__main__":
    key = jax.random.PRNGKey(0)
    kp, kx = jax.random.split(key)

    w1, b1, w2, b2 = init_params(kp, INPUT_SIZE, NUM_CLASSES, HIDDEN_LAYER)
    w1p, b1p, w2p, b2p = prepare_params(w1, b1, w2, b2)

    # MNIST-like batch; 200 exercises the 2-tile grid and the masked remainder rows.
    batch = 200
    x = jax.random.normal(kx, (batch, 1, 28, 28), dtype=jnp.float32)

    out = an_forward(x, w1p, b1p, w2p, b2p)
    out = jax.block_until_ready(out)
    assert out.shape == (batch, NUM_CLASSES)
    assert out.dtype == jnp.float32

    # reference checks in plain JAX
    x2d = x.reshape(batch, -1)
    ref_f32 = jnp.maximum(x2d @ w1 + b1, 0.0) @ w2 + b2
    h_bf = jnp.dot(x2d.astype(jnp.bfloat16), w1.astype(jnp.bfloat16),
                   preferred_element_type=jnp.float32) + b1
    ref_bf16 = jnp.dot(jnp.maximum(h_bf, 0.0).astype(jnp.bfloat16),
                       w2.astype(jnp.bfloat16),
                       preferred_element_type=jnp.float32) + b2

    assert jnp.allclose(out, ref_bf16, atol=2e-2, rtol=2e-2)   # matches bf16 math path
    assert jnp.allclose(out, ref_f32, atol=6e-2, rtol=6e-2)    # close to full-f32 math

    print("KERNEL_OK")
</pallas_src>

<mosaic_0001>
module attributes {stable_mosaic.version = 11 : i64} {
  func.func @_an_kernel(%arg0: i32, %arg1: memref<104x784xf32, #tpu.memory_space<vmem>>, %arg2: memref<784x128xbf16, #tpu.memory_space<vmem>>, %arg3: memref<1x128xf32, #tpu.memory_space<vmem>>, %arg4: memref<128x128xbf16, #tpu.memory_space<vmem>>, %arg5: memref<1x128xf32, #tpu.memory_space<vmem>>, %arg6: memref<104x128xbf16, #tpu.memory_space<vmem>>) attributes {dimension_semantics = [#tpu.dimension_semantics<parallel>], iteration_bounds = array<i64: 2>, scalar_prefetch = 0 : i64, scratch_operands = 0 : i64, tpu.core_type = #tpu.core_type<tc>, window_params = [{transform_indices = @transform_0, window_bounds = array<i64: 104, 784>}, {pipeline_mode = #tpu.pipeline_mode<synchronous>, transform_indices = @transform_1, window_bounds = array<i64: 784, 128>}, {pipeline_mode = #tpu.pipeline_mode<synchronous>, transform_indices = @transform_2, window_bounds = array<i64: 1, 128>}, {pipeline_mode = #tpu.pipeline_mode<synchronous>, transform_indices = @transform_3, window_bounds = array<i64: 128, 128>}, {pipeline_mode = #tpu.pipeline_mode<synchronous>, transform_indices = @transform_4, window_bounds = array<i64: 1, 128>}, {transform_indices = @transform_5, window_bounds = array<i64: 104, 128>}]} {
    %c0 = arith.constant 0 : index
    %c0_0 = arith.constant 0 : index
    %0 = vector.load %arg1[%c0, %c0_0] : memref<104x784xf32, #tpu.memory_space<vmem>>, vector<104x784xf32>
    %1 = arith.truncf %0 : vector<104x784xf32> to vector<104x784xbf16>
    %c0_1 = arith.constant 0 : index
    %c0_2 = arith.constant 0 : index
    %2 = vector.load %arg2[%c0_1, %c0_2] : memref<784x128xbf16, #tpu.memory_space<vmem>>, vector<784x128xbf16>
    %cst = arith.constant dense<0.000000e+00> : vector<104x128xf32>
    %3 = tpu.matmul %1, %2, %cst {dimension_numbers = #tpu.dot_dimension_numbers<[1], [0], [0], [1], [0, 0, 1, 1], [], []>} : vector<104x784xbf16>, vector<784x128xbf16>, vector<104x128xf32> -> vector<104x128xf32>
    %c0_3 = arith.constant 0 : index
    %c0_4 = arith.constant 0 : index
    %4 = vector.load %arg3[%c0_3, %c0_4] : memref<1x128xf32, #tpu.memory_space<vmem>>, vector<1x128xf32>
    %5 = vector.broadcast %4 : vector<1x128xf32> to vector<104x128xf32>
    %6 = arith.addf %3, %5 : vector<104x128xf32>
    %cst_5 = arith.constant 0.000000e+00 : f32
    %7 = vector.broadcast %cst_5 : f32 to vector<104x128xf32>
    %8 = arith.maximumf %6, %7 : vector<104x128xf32>
    %9 = arith.truncf %8 : vector<104x128xf32> to vector<104x128xbf16>
    %c0_6 = arith.constant 0 : index
    %c0_7 = arith.constant 0 : index
    %10 = vector.load %arg4[%c0_6, %c0_7] : memref<128x128xbf16, #tpu.memory_space<vmem>>, vector<128x128xbf16>
    %cst_8 = arith.constant dense<0.000000e+00> : vector<104x128xf32>
    %11 = tpu.matmul %9, %10, %cst_8 {dimension_numbers = #tpu.dot_dimension_numbers<[1], [0], [0], [1], [0, 0, 1, 1], [], []>} : vector<104x128xbf16>, vector<128x128xbf16>, vector<104x128xf32> -> vector<104x128xf32>
    %c0_9 = arith.constant 0 : index
    %c0_10 = arith.constant 0 : index
    %12 = vector.load %arg5[%c0_9, %c0_10] : memref<1x128xf32, #tpu.memory_space<vmem>>, vector<1x128xf32>
    %13 = vector.broadcast %12 : vector<1x128xf32> to vector<104x128xf32>
    %14 = arith.addf %11, %13 : vector<104x128xf32>
    %15 = arith.truncf %14 : vector<104x128xf32> to vector<104x128xbf16>
    %c0_11 = arith.constant 0 : index
    %c0_12 = arith.constant 0 : index
    %16 = vector.load %arg6[%c0_11, %c0_12] : memref<104x128xbf16, #tpu.memory_space<vmem>>, vector<104x128xbf16>
    tpu.vector_store %arg6[%c0_11, %c0_12], %15 {strides = array<i32>} : memref<104x128xbf16, #tpu.memory_space<vmem>>, vector<104x128xbf16>,
    return
  }
  func.func @transform_0(%arg0: i32) -> (i32, i32) {
    %c0_i32 = arith.constant 0 : i32
    %c0_i32_0 = arith.constant 0 : i32
    return %arg0, %c0_i32 : i32, i32
  }
  func.func @transform_1(%arg0: i32) -> (i32, i32) {
    %c0_i32 = arith.constant 0 : i32
    %c0_i32_0 = arith.constant 0 : i32
    %c0_i32_1 = arith.constant 0 : i32
    return %c0_i32, %c0_i32_0 : i32, i32
  }
  func.func @transform_2(%arg0: i32) -> (i32, i32) {
    %c0_i32 = arith.constant 0 : i32
    %c0_i32_0 = arith.constant 0 : i32
    %c0_i32_1 = arith.constant 0 : i32
    return %c0_i32, %c0_i32_0 : i32, i32
  }
  func.func @transform_3(%arg0: i32) -> (i32, i32) {
    %c0_i32 = arith.constant 0 : i32
    %c0_i32_0 = arith.constant 0 : i32
    %c0_i32_1 = arith.constant 0 : i32
    return %c0_i32, %c0_i32_0 : i32, i32
  }
  func.func @transform_4(%arg0: i32) -> (i32, i32) {
    %c0_i32 = arith.constant 0 : i32
    %c0_i32_0 = arith.constant 0 : i32
    %c0_i32_1 = arith.constant 0 : i32
    return %c0_i32, %c0_i32_0 : i32, i32
  }
  func.func @transform_5(%arg0: i32) -> (i32, i32) {
    %c0_i32 = arith.constant 0 : i32
    %c0_i32_0 = arith.constant 0 : i32
    return %arg0, %c0_i32 : i32, i32
  }
}

</mosaic_0001>

<llo_original>
// kernel: tpu_custom_call.1
$region0: #{tpu_custom_call.1}
  #allocation0 [shape = 'u32[]', space=smem, size = 0x4, offset = 0x4, fixed_abs, tag = 'smem constant byte address 0x4 - core index']
  #allocation1 [shape = 'u32[144,128]{1,0:T(1,128)}', space=vmem, size = 0x12000, scoped, tag = 'internal scratch']
  %s0 = inlined_call_operand.hbm [shape: f32[200,784], index: 0, kind: input, shape index: {}]
  %s1 = inlined_call_operand.hbm [shape: bf16[784,128], index: 1, kind: input, shape index: {}]
  %s2 = inlined_call_operand.vmem [shape: f32[1,128], index: 2, kind: input, shape index: {}]
  %s3 = inlined_call_operand.hbm [shape: bf16[128,128], index: 3, kind: input, shape index: {}]
  %s4 = inlined_call_operand.vmem [shape: f32[1,128], index: 4, kind: input, shape index: {}]
  %s5 = inlined_call_operand.hbm [shape: bf16[200,128], index: 5, kind: output, shape index: {}]
  %s6 = sld [smem:[#allocation0]]
  $region65: #{tpu_custom_call.1} parent=0
    _
  %s8 = ssub.s32 1, %s6
  %s9 = scalar_select 0, %s8, %s6
  $region1: #{tpu_custom_call.1} parent=0
    #allocation2 [shape = 'u8[745472]{0}', space=vmem, size = 0xb6000, scoped, tag = 'input window, operand 0']
    #allocation3 [shape = 's32[2]{0}', space=sflag, size = 0x8, scoped, tag = 'scoped memory for tpu_custom_call.1']
    #allocation4 [shape = 's32[2]{0}', space=sflag, size = 0x8, scoped, tag = 'scoped memory for tpu_custom_call.1']
    #allocation5 [shape = 'u8[200704]{0}', space=vmem, size = 0x31000, scoped, tag = 'input window, operand 1, single buffered']
    #allocation6 [shape = 's32[1]{0}', space=sflag, size = 0x4, scoped, tag = 'scoped memory for tpu_custom_call.1']
    #allocation7 [shape = 'u8[32768]{0}', space=vmem, size = 0x8000, scoped, tag = 'input window, operand 3, single buffered']
    #allocation8 [shape = 'u8[53248]{0}', space=vmem, size = 0xd000, scoped, tag = 'output window, operand 0']
    %10 = vsyncpa [#allocation3], 0
    %s11 = scalar_lea.sflag [#allocation3], 1
    %12 = vsyncpa %s11, 0
    %13 = vsyncpa [#allocation6], 0
    %14 = vsyncpa [#allocation4], 0
    %s15 = scalar_lea.sflag [#allocation4], 1
    %16 = vsyncpa %s15, 0
    loop: start=0, step=1, limit=4
    $region2: #{tpu_custom_call.1} parent=1 // loop_pre_header
      _
    $region3: #{tpu_custom_call.1} parent=1 // loop_header
      %s18 = sphi 0, %s22
      %p19 = scmp.ge.s32.totalorder %s18, 4
      %s28 = sphi 0, %s30
      %s31 = sphi 0, %s28
      %s32 = sphi 0, %s31
      %s48 = sphi 0, %s32
      %s52 = sphi 0, %s52
      %s54 = sphi 0, %s52
      %s55 = sphi 0, %s54
      %s69 = sphi 0, %s55
      %s73 = sphi 0, %s73
      %s75 = sphi 0, %s73
      %s76 = sphi 0, %s75
      %s90 = sphi 0, %s76
      %s94 = sphi 0, %s94
      %s96 = sphi 0, %s94
      %s97 = sphi 0, %s96
      %s111 = sphi 0, %s97
      %s115 = sphi 0, %s115
      %s117 = sphi 0, %s115
      %s118 = sphi 0, %s117
      %s132 = sphi 0, %s118
      %s138 = sphi 0, %s140
      %s141 = sphi 0, %s138
      %s142 = sphi 0, %s141
      %s158 = sphi 0, %s142
    $region4: #{tpu_custom_call.1} parent=1 // loop_header_branch
      %21 = sbr.rel (%p19) target = $region8
    $region5: #{tpu_custom_call.1} parent=1 // loop_body
      %s23 = ssub.s32 %s18, 1
      %s24 = ssub.s32 %s18, 2
      %s25 = sadd.s32 %s18, 1
      %s26 = ssub.s32 %s18, %s25
      %p27 = scmp.eq.s32.totalorder %s26, 0
      %s29 = sadd.s32 %s28, 1
      %s30 = scalar_select %p27, %s28, %s29
      %p33 = pneg %p27
      %p34 = scmp.eq.s32.totalorder %s18, 1
      %p35 = por %p33, %p34
      %p36 = scmp.ne.s32.totalorder %s28, %s31
      %p37 = scmp.eq.s32.totalorder %s18, 0
      %p38 = por %p36, %p37
      %p39 = scmp.ne.s32.totalorder %s28, %s31
      %p40 = scmp.eq.s32.totalorder %s23, 1
      %p41 = por %p39, %p40
      %p42 = scmp.ne.s32.totalorder %s31, %s32
      %p43 = scmp.eq.s32.totalorder %s23, 0
      %p44 = por %p42, %p43
      %p45 = scmp.ne.s32.totalorder %s31, %s32
      %p46 = scmp.eq.s32.totalorder %s24, 1
      %p47 = por %p45, %p46
      %p49 = scmp.ne.s32.totalorder %s32, %s48
      %p50 = scmp.eq.s32.totalorder %s24, 0
      %p51 = por %p49, %p50
      %s53 = sadd.s32 %s52, 1
      %p56 = scmp.eq.s32.totalorder %s18, 1
      %p57 = scmp.ne.s32.totalorder %s52, %s54
      %p58 = scmp.eq.s32.totalorder %s18, 0
      %p59 = por %p57, %p58
      %p60 = scmp.ne.s32.totalorder %s52, %s54
      %p61 = scmp.eq.s32.totalorder %s23, 1
      %p62 = por %p60, %p61
      %p63 = scmp.ne.s32.totalorder %s54, %s55
      %p64 = scmp.eq.s32.totalorder %s23, 0
      %p65 = por %p63, %p64
      %p66 = scmp.ne.s32.totalorder %s54, %s55
      %p67 = scmp.eq.s32.totalorder %s24, 1
      %p68 = por %p66, %p67
      %p70 = scmp.ne.s32.totalorder %s55, %s69
      %p71 = scmp.eq.s32.totalorder %s24, 0
      %p72 = por %p70, %p71
      %s74 = sadd.s32 %s73, 1
      %p77 = scmp.eq.s32.totalorder %s18, 1
      %p78 = scmp.ne.s32.totalorder %s73, %s75
      %p79 = scmp.eq.s32.totalorder %s18, 0
      %p80 = por %p78, %p79
      %p81 = scmp.ne.s32.totalorder %s73, %s75
      %p82 = scmp.eq.s32.totalorder %s23, 1
      %p83 = por %p81, %p82
      %p84 = scmp.ne.s32.totalorder %s75, %s76
      %p85 = scmp.eq.s32.totalorder %s23, 0
      %p86 = por %p84, %p85
      %p87 = scmp.ne.s32.totalorder %s75, %s76
      %p88 = scmp.eq.s32.totalorder %s24, 1
      %p89 = por %p87, %p88
      %p91 = scmp.ne.s32.totalorder %s76, %s90
      %p92 = scmp.eq.s32.totalorder %s24, 0
      %p93 = por %p91, %p92
      %s95 = sadd.s32 %s94, 1
      %p98 = scmp.eq.s32.totalorder %s18, 1
      %p99 = scmp.ne.s32.totalorder %s94, %s96
      %p100 = scmp.eq.s32.totalorder %s18, 0
      %p101 = por %p99, %p100
      %p102 = scmp.ne.s32.totalorder %s94, %s96
      %p103 = scmp.eq.s32.totalorder %s23, 1
      %p104 = por %p102, %p103
      %p105 = scmp.ne.s32.totalorder %s96, %s97
      %p106 = scmp.eq.s32.totalorder %s23, 0
      %p107 = por %p105, %p106
      %p108 = scmp.ne.s32.totalorder %s96, %s97
      %p109 = scmp.eq.s32.totalorder %s24, 1
      %p110 = por %p108, %p109
      %p112 = scmp.ne.s32.totalorder %s97, %s111
      %p113 = scmp.eq.s32.totalorder %s24, 0
      %p114 = por %p112, %p113
      %s116 = sadd.s32 %s115, 1
      %p119 = scmp.eq.s32.totalorder %s18, 1
      %p120 = scmp.ne.s32.totalorder %s115, %s117
      %p121 = scmp.eq.s32.totalorder %s18, 0
      %p122 = por %p120, %p121
      %p123 = scmp.ne.s32.totalorder %s115, %s117
      %p124 = scmp.eq.s32.totalorder %s23, 1
      %p125 = por %p123, %p124
      %p126 = scmp.ne.s32.totalorder %s117, %s118
      %p127 = scmp.eq.s32.totalorder %s23, 0
      %p128 = por %p126, %p127
      %p129 = scmp.ne.s32.totalorder %s117, %s118
      %p130 = scmp.eq.s32.totalorder %s24, 1
      %p131 = por %p129, %p130
      %p133 = scmp.ne.s32.totalorder %s118, %s132
      %p134 = scmp.eq.s32.totalorder %s24, 0
      %p135 = por %p133, %p134
      %s136 = ssub.s32 %s18, %s25
      %p137 = scmp.eq.s32.totalorder %s136, 0
      %s139 = sadd.s32 %s138, 1
      %s140 = scalar_select %p137, %s138, %s139
      %p143 = pneg %p137
      %p144 = scmp.eq.s32.totalorder %s18, 1
      %p145 = por %p143, %p144
      %p146 = scmp.ne.s32.totalorder %s138, %s141
      %p147 = scmp.eq.s32.totalorder %s18, 0
      %p148 = por %p146, %p147
      %p149 = scmp.ne.s32.totalorder %s138, %s141
      %p150 = scmp.eq.s32.totalorder %s23, 1
      %p151 = por %p149, %p150
      %p152 = scmp.ne.s32.totalorder %s141, %s142
      %p153 = scmp.eq.s32.totalorder %s23, 0
      %p154 = por %p152, %p153
      %p155 = scmp.ne.s32.totalorder %s141, %s142
      %p156 = scmp.eq.s32.totalorder %s24, 1
      %p157 = por %p155, %p156
      %p159 = scmp.ne.s32.totalorder %s142, %s158
      %p160 = scmp.eq.s32.totalorder %s24, 0
      %p161 = por %p159, %p160
      %p162 = scmp.le.s32.totalorder 1, %s18
      %p163 = scmp.lt.s32.totalorder %s18, 3
      %p164 = pnand %p162, %p163
      %p165 = pneg %p164
      // Predicated region
      $region9: #{tpu_custom_call.1} parent=5 // pred_check
        _
      $region10: #{tpu_custom_call.1} parent=5 // pred_check_branch
        %167 = sbr.rel (%p164) target = $region12
      $region11: #{tpu_custom_call.1} parent=5 // pred_region
        %s168 = ssub.s32 %s18, 1
        // Predicated region
        $region13: #{tpu_custom_call.1} parent=11 // pred_check
          %p169 = pneg %p65
        $region14: #{tpu_custom_call.1} parent=11 // pred_check_branch
          %171 = sbr.rel (%p169) target = $region16
        $region15: #{tpu_custom_call.1} parent=11 // pred_region
          %s173 = ssub.s32 6272, 6272
          %174 = vsyncadd [#allocation6], %s173
          %s175 = sshll.u32 [#allocation5], 4
          %s176 = int_to_ptr.vmem [resolvable:$true] %s175
          %181 = dma.hbm_to_vmem [thread:$0]  %s1, 6272, %s176, [#allocation6], 64, 64, 4
        $region16: #{tpu_custom_call.1} parent=11 // pred_fallthru
          _
        // Predicated region
        $region17: #{tpu_custom_call.1} parent=11 // pred_check
          %p182 = pneg %p86
        $region18: #{tpu_custom_call.1} parent=11 // pred_check_branch
          %184 = sbr.rel (%p182) target = $region20
        $region19: #{tpu_custom_call.1} parent=11 // pred_region
          _
        $region20: #{tpu_custom_call.1} parent=11 // pred_fallthru
          _
        // Predicated region
        $region21: #{tpu_custom_call.1} parent=11 // pred_check
          %p185 = pneg %p107
        $region22: #{tpu_custom_call.1} parent=11 // pred_check_branch
          %187 = sbr.rel (%p185) target = $region24
        $region23: #{tpu_custom_call.1} parent=11 // pred_region
          %s189 = ssub.s32 1024, 1024
          %190 = vsyncadd [#allocation6], %s189
          %s191 = sshll.u32 [#allocation7], 4
          %s192 = int_to_ptr.vmem [resolvable:$true] %s191
          %197 = dma.hbm_to_vmem [thread:$0]  %s3, 1024, %s192, [#allocation6], 64, 64, 4
        $region24: #{tpu_custom_call.1} parent=11 // pred_fallthru
          _
        // Predicated region
        $region25: #{tpu_custom_call.1} parent=11 // pred_check
          %p198 = pneg %p128
        $region26: #{tpu_custom_call.1} parent=11 // pred_check_branch
          %200 = sbr.rel (%p198) target = $region28
        $region27: #{tpu_custom_call.1} parent=11 // pred_region
          _
        $region28: #{tpu_custom_call.1} parent=11 // pred_fallthru
          _
      $region12: #{tpu_custom_call.1} parent=5 // pred_fallthru
        _
      %p201 = scmp.lt.s32.totalorder %s18, 2
      // Predicated region
      $region29: #{tpu_custom_call.1} parent=5 // pred_check
        %p202 = pneg %p201
      $region30: #{tpu_custom_call.1} parent=5 // pred_check_branch
        %204 = sbr.rel (%p202) target = $region32
      $region31: #{tpu_custom_call.1} parent=5 // pred_region
        // Predicated region
        $region33: #{tpu_custom_call.1} parent=31 // pred_check
          %p205 = pneg %p38
        $region34: #{tpu_custom_call.1} parent=31 // pred_check_branch
          %207 = sbr.rel (%p205) target = $region36
        $region35: #{tpu_custom_call.1} parent=31 // pred_region
          %s208 = sand.u32 %s28, 1
          %s209 = scalar_lea.sflag [#allocation3], %s208
          %s210 = sand.u32 %s28, 1
          %s211 = smul.addr %s210, 728
          %s212 = scalar_lea.vmem [#allocation2], %s211
          %s213 = smul.u32 13, %s18
          %s214 = ssub.s32 25, %s213
          %p215 = scmp.lt.s32.totalorder %s214, 13
          %s216 = scalar_select %p215, %s214, 13
          %s217 = smul.u32 128, %s216
          %s218 = smul.u32 %s217, 7
          %s220 = ssub.s32 11648, %s218
          %221 = vsyncadd %s209, %s220
          %p222 = scmp.ne.s32.totalorder 0, %s218
          %s223 = smul.addr %s213, 7
          %s224 = smul.addr %s223, 128
          %s225 = scalar_lea.hbm %s0, %s224
          %s226 = smul.u32 56, %s216
          %s227 = sshll.u32 %s212, 4
          %s228 = int_to_ptr.vmem [resolvable:$true] %s227
          %s229 = sshll.u32 %s226, 4
          %233 = dma.hbm_to_vmem [thread:$0]  (%p222), %s225, %s229, %s228, %s209, 896, 896, 56
        $region36: #{tpu_custom_call.1} parent=31 // pred_fallthru
          _
      $region32: #{tpu_custom_call.1} parent=5 // pred_fallthru
        _
      %p234 = scmp.le.s32.totalorder 1, %s18
      %p235 = scmp.lt.s32.totalorder %s18, 3
      %p236 = pnand %p234, %p235
      %p237 = pneg %p236
      // Predicated region
      $region37: #{tpu_custom_call.1} parent=5 // pred_check
        _
      $region38: #{tpu_custom_call.1} parent=5 // pred_check_branch
        %239 = sbr.rel (%p236) target = $region40
      $region39: #{tpu_custom_call.1} parent=5 // pred_region
        %s240 = ssub.s32 %s18, 1
        %s241 = sand.u32 %s31, 1
        %s242 = scalar_lea.sflag [#allocation3], %s241
        %s243 = sand.u32 %s31, 1
        %s244 = smul.addr %s243, 728
        %s245 = scalar_lea.vmem [#allocation2], %s244
        // Predicated region
        $region41: #{tpu_custom_call.1} parent=39 // pred_check
          %p246 = pneg %p44
        $region42: #{tpu_custom_call.1} parent=39 // pred_check_branch
          %248 = sbr.rel (%p246) target = $region44
        $region43: #{tpu_custom_call.1} parent=39 // pred_region
          %249 = dma.done %s242, 11648
        $region44: #{tpu_custom_call.1} parent=39 // pred_fallthru
          _
        // Predicated region
        $region45: #{tpu_custom_call.1} parent=39 // pred_check
          %p250 = pneg %p65
        $region46: #{tpu_custom_call.1} parent=39 // pred_check_branch
          %252 = sbr.rel (%p250) target = $region48
        $region47: #{tpu_custom_call.1} parent=39 // pred_region
          %253 = dma.done [#allocation6], 6272
        $region48: #{tpu_custom_call.1} parent=39 // pred_fallthru
          _
        // Predicated region
        $region49: #{tpu_custom_call.1} parent=39 // pred_check
          %p254 = pneg %p107
        $region50: #{tpu_custom_call.1} parent=39 // pred_check_branch
          %256 = sbr.rel (%p254) target = $region52
        $region51: #{tpu_custom_call.1} parent=39 // pred_region
          %257 = dma.done [#allocation6], 1024
        $region52: #{tpu_custom_call.1} parent=39 // pred_fallthru
          _
        %s258 = sand.u32 %s31, 1
        %s259 = scalar_lea.sflag [#allocation3], %s258
        %s260 = sand.u32 %s31, 1
        %s261 = smul.addr %s260, 728
        %s262 = scalar_lea.vmem [#allocation2], %s261
        %p263 = pneg %p44
        %p264 = pneg %p41
        %p265 = pneg %p65
        %p266 = pneg %p62
        %p267 = pneg %p86
        %p268 = pneg %p83
        %p269 = pneg %p107
        %p270 = pneg %p104
        %p271 = pneg %p128
        %p272 = pneg %p125
        %p273 = pneg %p154
        %p274 = pneg %p151
        %s275 = sand.u32 %s141, 1
        %s276 = scalar_lea.sflag [#allocation4], %s275
        %s277 = sand.u32 %s141, 1
        %s278 = smul.addr %s277, 52
        %s279 = scalar_lea.vmem [#allocation8], %s278
        %s280 = smul.u32 13, %s23
        %s281 = ssub.s32 25, %s280
        %p282 = scmp.lt.s32.totalorder %s281, 13
        %s283 = scalar_select %p282, %s281, 13
        %s284 = smul.u32 128, %s283
        %s285 = smul.u32 %s284, 7
        %s286 = smul.u32 13, %s23
        %s287 = ssub.s32 25, %s286
        %p288 = scmp.lt.s32.totalorder %s287, 13
        %s289 = scalar_select %p288, %s287, 13
        %s290 = smul.u32 64, %s289
        %v292 = vld [vmem:[%s245] sm:$0xff]
        %v293 = vld [vmem:[%s245 + $0x8] sm:$0xff]
        %v294 = vld [vmem:[%s245 + $0x10] sm:$0xff]
        %v295 = vld [vmem:[%s245 + $0x18] sm:$0xff]
        %v296 = vld [vmem:[%s245 + $0x20] sm:$0xff]
        %v297 = vld [vmem:[%s245 + $0x28] sm:$0xff]
        %v298 = vld [vmem:[%s245 + $0x30] sm:$0xff]
        %v299 = vld [vmem:[%s245 + $0x38] sm:$0xff]
        %v300 = vld [vmem:[%s245 + $0x40] sm:$0xff]
        %v301 = vld [vmem:[%s245 + $0x48] sm:$0xff]
        %v302 = vld [vmem:[%s245 + $0x50] sm:$0xff]
        %v303 = vld [vmem:[%s245 + $0x58] sm:$0xff]
        %v304 = vld [vmem:[%s245 + $0x60] sm:$0xff]
        %v305 = vld [vmem:[%s245 + $0x68] sm:$0xff]
        %v306 = vld [vmem:[%s245 + $0x70] sm:$0xff]
        %v307 = vld [vmem:[%s245 + $0x78] sm:$0xff]
        %v308 = vld [vmem:[%s245 + $0x80] sm:$0xff]
        %v309 = vld [vmem:[%s245 + $0x88] sm:$0xff]
        %v310 = vld [vmem:[%s245 + $0x90] sm:$0xff]
        %v311 = vld [vmem:[%s245 + $0x98] sm:$0xff]
        %v312 = vld [vmem:[%s245 + $0xa0] sm:$0xff]
        %v313 = vld [vmem:[%s245 + $0xa8] sm:$0xff]
        %v314 = vld [vmem:[%s245 + $0xb0] sm:$0xff]
        %v315 = vld [vmem:[%s245 + $0xb8] sm:$0xff]
        %v316 = vld [vmem:[%s245 + $0xc0] sm:$0xff]
        %v317 = vld [vmem:[%s245 + $0xc8] sm:$0xff]
        %v318 = vld [vmem:[%s245 + $0xd0] sm:$0xff]
        %v319 = vld [vmem:[%s245 + $0xd8] sm:$0xff]
        %v320 = vld [vmem:[%s245 + $0xe0] sm:$0xff]
        %v321 = vld [vmem:[%s245 + $0xe8] sm:$0xff]
        %v322 = vld [vmem:[%s245 + $0xf0] sm:$0xff]
        %v323 = vld [vmem:[%s245 + $0xf8] sm:$0xff]
        %v324 = vld [vmem:[%s245 + $0x100] sm:$0xff]
        %v325 = vld [vmem:[%s245 + $0x108] sm:$0xff]
        %v326 = vld [vmem:[%s245 + $0x110] sm:$0xff]
        %v327 = vld [vmem:[%s245 + $0x118] sm:$0xff]
        %v328 = vld [vmem:[%s245 + $0x120] sm:$0xff]
        %v329 = vld [vmem:[%s245 + $0x128] sm:$0xff]
        %v330 = vld [vmem:[%s245 + $0x130] sm:$0xff]
        %v331 = vld [vmem:[%s245 + $0x138] sm:$0xff]
        %v332 = vld [vmem:[%s245 + $0x140] sm:$0xff]
        %v333 = vld [vmem:[%s245 + $0x148] sm:$0xff]
        %v334 = vld [vmem:[%s245 + $0x150] sm:$0xff]
        %v335 = vld [vmem:[%s245 + $0x158] sm:$0xff]
        %v336 = vld [vmem:[%s245 + $0x160] sm:$0xff]
        %v337 = vld [vmem:[%s245 + $0x168] sm:$0xff]
        %v338 = vld [vmem:[%s245 + $0x170] sm:$0xff]
        %v339 = vld [vmem:[%s245 + $0x178] sm:$0xff]
        %v340 = vld [vmem:[%s245 + $0x180] sm:$0xff]
        %v341 = vld [vmem:[%s245 + $0x188] sm:$0xff]
        %v342 = vld [vmem:[%s245 + $0x190] sm:$0xff]
        %v343 = vld [vmem:[%s245 + $0x198] sm:$0xff]
        %v344 = vld [vmem:[%s245 + $0x1a0] sm:$0xff]
        %v345 = vld [vmem:[%s245 + $0x1a8] sm:$0xff]
        %v346 = vld [vmem:[%s245 + $0x1b0] sm:$0xff]
        %v347 = vld [vmem:[%s245 + $0x1b8] sm:$0xff]
        %v348 = vld [vmem:[%s245 + $0x1c0] sm:$0xff]
        %v349 = vld [vmem:[%s245 + $0x1c8] sm:$0xff]
        %v350 = vld [vmem:[%s245 + $0x1d0] sm:$0xff]
        %v351 = vld [vmem:[%s245 + $0x1d8] sm:$0xff]
        %v352 = vld [vmem:[%s245 + $0x1e0] sm:$0xff]
        %v353 = vld [vmem:[%s245 + $0x1e8] sm:$0xff]
        %v354 = vld [vmem:[%s245 + $0x1f0] sm:$0xff]
        %v355 = vld [vmem:[%s245 + $0x1f8] sm:$0xff]
        %v356 = vld [vmem:[%s245 + $0x200] sm:$0xff]
        %v357 = vld [vmem:[%s245 + $0x208] sm:$0xff]
        %v358 = vld [vmem:[%s245 + $0x210] sm:$0xff]
        %v359 = vld [vmem:[%s245 + $0x218] sm:$0xff]
        %v360 = vld [vmem:[%s245 + $0x220] sm:$0xff]
        %v361 = vld [vmem:[%s245 + $0x228] sm:$0xff]
        %v362 = vld [vmem:[%s245 + $0x230] sm:$0xff]
        %v363 = vld [vmem:[%s245 + $0x238] sm:$0xff]
        %v364 = vld [vmem:[%s245 + $0x240] sm:$0xff]
        %v365 = vld [vmem:[%s245 + $0x248] sm:$0xff]
        %v366 = vld [vmem:[%s245 + $0x250] sm:$0xff]
        %v367 = vld [vmem:[%s245 + $0x258] sm:$0xff]
        %v368 = vld [vmem:[%s245 + $0x260] sm:$0xff]
        %v369 = vld [vmem:[%s245 + $0x268] sm:$0xff]
        %v370 = vld [vmem:[%s245 + $0x270] sm:$0xff]
        %v371 = vld [vmem:[%s245 + $0x278] sm:$0xff]
        %v372 = vld [vmem:[%s245 + $0x280] sm:$0xff]
        %v373 = vld [vmem:[%s245 + $0x288] sm:$0xff]
        %v374 = vld [vmem:[%s245 + $0x290] sm:$0xff]
        %v375 = vld [vmem:[%s245 + $0x298] sm:$0xff]
        %v376 = vld [vmem:[%s245 + $0x2a0] sm:$0xff]
        %v377 = vld [vmem:[%s245 + $0x2a8] sm:$0xff]
        %v378 = vld [vmem:[%s245 + $0x2b0] sm:$0xff]
        %v379 = vld [vmem:[%s245 + $0x2b8] sm:$0xff]
        %v380 = vld [vmem:[%s245 + $0x2c0] sm:$0xff]
        %v381 = vld [vmem:[%s245 + $0x2c8] sm:$0xff]
        %v382 = vld [vmem:[%s245 + $0x2d0] sm:$0xff]
        %v383 = vpack.c.bf16 %v299, %v292
        %v384 = vpack.c.bf16 %v300, %v293
        %v385 = vpack.c.bf16 %v301, %v294
        %v386 = vpack.c.bf16 %v302, %v295
        %v387 = vpack.c.bf16 %v303, %v296
        %v388 = vpack.c.bf16 %v304, %v297
        %v389 = vpack.c.bf16 %v305, %v298
        %v390 = vpack.c.bf16 %v313, %v306
        %v391 = vpack.c.bf16 %v314, %v307
        %v392 = vpack.c.bf16 %v315, %v308
        %v393 = vpack.c.bf16 %v316, %v309
        %v394 = vpack.c.bf16 %v317, %v310
        %v395 = vpack.c.bf16 %v318, %v311
        %v396 = vpack.c.bf16 %v319, %v312
        %v397 = vpack.c.bf16 %v327, %v320
        %v398 = vpack.c.bf16 %v328, %v321
        %v399 = vpack.c.bf16 %v329, %v322
        %v400 = vpack.c.bf16 %v330, %v323
        %v401 = vpack.c.bf16 %v331, %v324
        %v402 = vpack.c.bf16 %v332, %v325
        %v403 = vpack.c.bf16 %v333, %v326
        %v404 = vpack.c.bf16 %v341, %v334
        %v405 = vpack.c.bf16 %v342, %v335
        %v406 = vpack.c.bf16 %v343, %v336
        %v407 = vpack.c.bf16 %v344, %v337
        %v408 = vpack.c.bf16 %v345, %v338
        %v409 = vpack.c.bf16 %v346, %v339
        %v410 = vpack.c.bf16 %v347, %v340
        %v411 = vpack.c.bf16 %v355, %v348
        %v412 = vpack.c.bf16 %v356, %v349
        %v413 = vpack.c.bf16 %v357, %v350
        %v414 = vpack.c.bf16 %v358, %v351
        %v415 = vpack.c.bf16 %v359, %v352
        %v416 = vpack.c.bf16 %v360, %v353
        %v417 = vpack.c.bf16 %v361, %v354
        %v418 = vpack.c.bf16 %v369, %v362
        %v419 = vpack.c.bf16 %v370, %v363
        %v420 = vpack.c.bf16 %v371, %v364
        %v421 = vpack.c.bf16 %v372, %v365
        %v422 = vpack.c.bf16 %v373, %v366
        %v423 = vpack.c.bf16 %v374, %v367
        %v424 = vpack.c.bf16 %v375, %v368
        %v425 = vpack.c.bf16 %v376, %v376
        %v426 = vpack.c.bf16 %v377, %v377
        %v427 = vpack.c.bf16 %v378, %v378
        %v428 = vpack.c.bf16 %v379, %v379
        %v429 = vpack.c.bf16 %v380, %v380
        %v430 = vpack.c.bf16 %v381, %v381
        %v431 = vpack.c.bf16 %v382, %v382
        %v432 = vld [vmem:[#allocation5] sm:$0xf]
        %v433 = vld [vmem:[#allocation5 + $0x4] sm:$0xf]
        %v434 = vld [vmem:[#allocation5 + $0x8] sm:$0xf]
        %v435 = vld [vmem:[#allocation5 + $0xc] sm:$0xf]
        %v436 = vld [vmem:[#allocation5 + $0x10] sm:$0xf]
        %v437 = vld [vmem:[#allocation5 + $0x14] sm:$0xf]
        %v438 = vld [vmem:[#allocation5 + $0x18] sm:$0xf]
        %v439 = vld [vmem:[#allocation5 + $0x1c] sm:$0xf]
        %v440 = vld [vmem:[#allocation5 + $0x20] sm:$0xf]
        %v441 = vld [vmem:[#allocation5 + $0x24] sm:$0xf]
        %v442 = vld [vmem:[#allocation5 + $0x28] sm:$0xf]
        %v443 = vld [vmem:[#allocation5 + $0x2c] sm:$0xf]
        %v444 = vld [vmem:[#allocation5 + $0x30] sm:$0xf]
        %v445 = vld [vmem:[#allocation5 + $0x34] sm:$0xf]
        %v446 = vld [vmem:[#allocation5 + $0x38] sm:$0xf]
        %v447 = vld [vmem:[#allocation5 + $0x3c] sm:$0xf]
        %v448 = vld [vmem:[#allocation5 + $0x40] sm:$0xf]
        %v449 = vld [vmem:[#allocation5 + $0x44] sm:$0xf]
        %v450 = vld [vmem:[#allocation5 + $0x48] sm:$0xf]
        %v451 = vld [vmem:[#allocation5 + $0x4c] sm:$0xf]
        %v452 = vld [vmem:[#allocation5 + $0x50] sm:$0xf]
        %v453 = vld [vmem:[#allocation5 + $0x54] sm:$0xf]
        %v454 = vld [vmem:[#allocation5 + $0x58] sm:$0xf]
        %v455 = vld [vmem:[#allocation5 + $0x5c] sm:$0xf]
        %v456 = vld [vmem:[#allocation5 + $0x60] sm:$0xf]
        %v457 = vld [vmem:[#allocation5 + $0x64] sm:$0xf]
        %v458 = vld [vmem:[#allocation5 + $0x68] sm:$0xf]
        %v459 = vld [vmem:[#allocation5 + $0x6c] sm:$0xf]
        %v460 = vld [vmem:[#allocation5 + $0x70] sm:$0xf]
        %v461 = vld [vmem:[#allocation5 + $0x74] sm:$0xf]
        %v462 = vld [vmem:[#allocation5 + $0x78] sm:$0xf]
        %v463 = vld [vmem:[#allocation5 + $0x7c] sm:$0xf]
        %v464 = vld [vmem:[#allocation5 + $0x80] sm:$0xf]
        %v465 = vld [vmem:[#allocation5 + $0x84] sm:$0xf]
        %v466 = vld [vmem:[#allocation5 + $0x88] sm:$0xf]
        %v467 = vld [vmem:[#allocation5 + $0x8c] sm:$0xf]
        %v468 = vld [vmem:[#allocation5 + $0x90] sm:$0xf]
        %v469 = vld [vmem:[#allocation5 + $0x94] sm:$0xf]
        %v470 = vld [vmem:[#allocation5 + $0x98] sm:$0xf]
        %v471 = vld [vmem:[#allocation5 + $0x9c] sm:$0xf]
        %v472 = vld [vmem:[#allocation5 + $0xa0] sm:$0xf]
        %v473 = vld [vmem:[#allocation5 + $0xa4] sm:$0xf]
        %v474 = vld [vmem:[#allocation5 + $0xa8] sm:$0xf]
        %v475 = vld [vmem:[#allocation5 + $0xac] sm:$0xf]
        %v476 = vld [vmem:[#allocation5 + $0xb0] sm:$0xf]
        %v477 = vld [vmem:[#allocation5 + $0xb4] sm:$0xf]
        %v478 = vld [vmem:[#allocation5 + $0xb8] sm:$0xf]
        %v479 = vld [vmem:[#allocation5 + $0xbc] sm:$0xf]
        %v480 = vld [vmem:[#allocation5 + $0xc0] sm:$0xf]
        %v481 = vld [vmem:[#allocation5 + $0xc4] sm:$0xf]
        %v482 = vld [vmem:[#allocation5 + $0xc8] sm:$0xf]
        %v483 = vld [vmem:[#allocation5 + $0xcc] sm:$0xf]
        %v484 = vld [vmem:[#allocation5 + $0xd0] sm:$0xf]
        %v485 = vld [vmem:[#allocation5 + $0xd4] sm:$0xf]
        %v486 = vld [vmem:[#allocation5 + $0xd8] sm:$0xf]
        %v487 = vld [vmem:[#allocation5 + $0xdc] sm:$0xf]
        %v488 = vld [vmem:[#allocation5 + $0xe0] sm:$0xf]
        %v489 = vld [vmem:[#allocation5 + $0xe4] sm:$0xf]
        %v490 = vld [vmem:[#allocation5 + $0xe8] sm:$0xf]
        %v491 = vld [vmem:[#allocation5 + $0xec] sm:$0xf]
        %v492 = vld [vmem:[#allocation5 + $0xf0] sm:$0xf]
        %v493 = vld [vmem:[#allocation5 + $0xf4] sm:$0xf]
        %v494 = vld [vmem:[#allocation5 + $0xf8] sm:$0xf]
        %v495 = vld [vmem:[#allocation5 + $0xfc] sm:$0xf]
        %v496 = vld [vmem:[#allocation5 + $0x100] sm:$0xf]
        %v497 = vld [vmem:[#allocation5 + $0x104] sm:$0xf]
        %v498 = vld [vmem:[#allocation5 + $0x108] sm:$0xf]
        %v499 = vld [vmem:[#allocation5 + $0x10c] sm:$0xf]
        %v500 = vld [vmem:[#allocation5 + $0x110] sm:$0xf]
        %v501 = vld [vmem:[#allocation5 + $0x114] sm:$0xf]
        %v502 = vld [vmem:[#allocation5 + $0x118] sm:$0xf]
        %v503 = vld [vmem:[#allocation5 + $0x11c] sm:$0xf]
        %v504 = vld [vmem:[#allocation5 + $0x120] sm:$0xf]
        %v505 = vld [vmem:[#allocation5 + $0x124] sm:$0xf]
        %v506 = vld [vmem:[#allocation5 + $0x128] sm:$0xf]
        %v507 = vld [vmem:[#allocation5 + $0x12c] sm:$0xf]
        %v508 = vld [vmem:[#allocation5 + $0x130] sm:$0xf]
        %v509 = vld [vmem:[#allocation5 + $0x134] sm:$0xf]
        %v510 = vld [vmem:[#allocation5 + $0x138] sm:$0xf]
        %v511 = vld [vmem:[#allocation5 + $0x13c] sm:$0xf]
        %v512 = vld [vmem:[#allocation5 + $0x140] sm:$0xf]
        %v513 = vld [vmem:[#allocation5 + $0x144] sm:$0xf]
        %v514 = vld [vmem:[#allocation5 + $0x148] sm:$0xf]
        %v515 = vld [vmem:[#allocation5 + $0x14c] sm:$0xf]
        %v516 = vld [vmem:[#allocation5 + $0x150] sm:$0xf]
        %v517 = vld [vmem:[#allocation5 + $0x154] sm:$0xf]
        %v518 = vld [vmem:[#allocation5 + $0x158] sm:$0xf]
        %v519 = vld [vmem:[#allocation5 + $0x15c] sm:$0xf]
        %v520 = vld [vmem:[#allocation5 + $0x160] sm:$0xf]
        %v521 = vld [vmem:[#allocation5 + $0x164] sm:$0xf]
        %v522 = vld [vmem:[#allocation5 + $0x168] sm:$0xf]
        %v523 = vld [vmem:[#allocation5 + $0x16c] sm:$0xf]
        %v524 = vld [vmem:[#allocation5 + $0x170] sm:$0xf]
        %v525 = vld [vmem:[#allocation5 + $0x174] sm:$0xf]
        %v526 = vld [vmem:[#allocation5 + $0x178] sm:$0xf]
        %v527 = vld [vmem:[#allocation5 + $0x17c] sm:$0xf]
        %v528 = vld [vmem:[#allocation5 + $0x180] sm:$0xf]
        %v529 = vld [vmem:[#allocation5 + $0x184] sm:$0xf]
        %v530 = vld [vmem:[%s2] sm:$0x1]
        %v532 = vlaneseq
        %v533 = vshrl.u32 %v532, 7
        %v534 = vsub.s32 0, %v533
        %v535 = vrot.slane %v530, %v534
        %v635 = vunpack.c.l.b16 %v432
        %v636 = vunpack.c.l.b16 %v433
        %v637 = vunpack.c.l.b16 %v434
        %v638 = vunpack.c.l.b16 %v435
        %v639 = vunpack.c.l.b16 %v436
        %v640 = vunpack.c.l.b16 %v437
        %v641 = vunpack.c.l.b16 %v438
        %v642 = vunpack.c.l.b16 %v439
        %v643 = vunpack.c.l.b16 %v440
        %v644 = vunpack.c.l.b16 %v441
        %v645 = vunpack.c.l.b16 %v442
        %v646 = vunpack.c.l.b16 %v443
        %v647 = vunpack.c.l.b16 %v444
        %v648 = vunpack.c.l.b16 %v445
        %v649 = vunpack.c.l.b16 %v446
        %v650 = vunpack.c.l.b16 %v447
        %v651 = vunpack.c.l.b16 %v448
        %v652 = vunpack.c.l.b16 %v449
        %v653 = vunpack.c.l.b16 %v450
        %v654 = vunpack.c.l.b16 %v451
        %v655 = vunpack.c.l.b16 %v452
        %v656 = vunpack.c.l.b16 %v453
        %v657 = vunpack.c.l.b16 %v454
        %v658 = vunpack.c.l.b16 %v455
        %v659 = vunpack.c.l.b16 %v456
        %v660 = vunpack.c.l.b16 %v457
        %v661 = vunpack.c.l.b16 %v458
        %v662 = vunpack.c.l.b16 %v459
        %v663 = vunpack.c.l.b16 %v460
        %v664 = vunpack.c.l.b16 %v461
        %v665 = vunpack.c.l.b16 %v462
        %v666 = vunpack.c.l.b16 %v463
        %v667 = vunpack.c.l.b16 %v464
        %v668 = vunpack.c.l.b16 %v465
        %v669 = vunpack.c.l.b16 %v466
        %v670 = vunpack.c.l.b16 %v467
        %v671 = vunpack.c.l.b16 %v468
        %v672 = vunpack.c.l.b16 %v469
        %v673 = vunpack.c.l.b16 %v470
        %v674 = vunpack.c.l.b16 %v471
        %v675 = vunpack.c.l.b16 %v472
        %v676 = vunpack.c.l.b16 %v473
        %v677 = vunpack.c.l.b16 %v474
        %v678 = vunpack.c.l.b16 %v475
        %v679 = vunpack.c.l.b16 %v476
        %v680 = vunpack.c.l.b16 %v477
        %v681 = vunpack.c.l.b16 %v478
        %v682 = vunpack.c.l.b16 %v479
        %v683 = vunpack.c.l.b16 %v480
        %v684 = vunpack.c.l.b16 %v481
        %v685 = vunpack.c.l.b16 %v482
        %v686 = vunpack.c.l.b16 %v483
        %v687 = vunpack.c.l.b16 %v484
        %v688 = vunpack.c.l.b16 %v485
        %v689 = vunpack.c.l.b16 %v486
        %v690 = vunpack.c.l.b16 %v487
        %v691 = vunpack.c.l.b16 %v488
        %v692 = vunpack.c.l.b16 %v489
        %v693 = vunpack.c.l.b16 %v490
        %v694 = vunpack.c.l.b16 %v491
        %v695 = vunpack.c.l.b16 %v492
        %v696 = vunpack.c.l.b16 %v493
        %v697 = vunpack.c.l.b16 %v494
        %v698 = vunpack.c.l.b16 %v495
        %v699 = vunpack.c.l.b16 %v496
        %v700 = vunpack.c.l.b16 %v497
        %v701 = vunpack.c.l.b16 %v498
        %v702 = vunpack.c.l.b16 %v499
        %v703 = vunpack.c.l.b16 %v500
        %v704 = vunpack.c.l.b16 %v501
        %v705 = vunpack.c.l.b16 %v502
        %v706 = vunpack.c.l.b16 %v503
        %v707 = vunpack.c.l.b16 %v504
        %v708 = vunpack.c.l.b16 %v505
        %v709 = vunpack.c.l.b16 %v506
        %v710 = vunpack.c.l.b16 %v507
        %v711 = vunpack.c.l.b16 %v508
        %v712 = vunpack.c.l.b16 %v509
        %v713 = vunpack.c.l.b16 %v510
        %v714 = vunpack.c.l.b16 %v511
        %v715 = vunpack.c.l.b16 %v512
        %v716 = vunpack.c.l.b16 %v513
        %v717 = vunpack.c.l.b16 %v514
        %v718 = vunpack.c.l.b16 %v515
        %v719 = vunpack.c.l.b16 %v516
        %v720 = vunpack.c.l.b16 %v517
        %v721 = vunpack.c.l.b16 %v518
        %v722 = vunpack.c.l.b16 %v519
        %v723 = vunpack.c.l.b16 %v520
        %v724 = vunpack.c.l.b16 %v521
        %v725 = vunpack.c.l.b16 %v522
        %v726 = vunpack.c.l.b16 %v523
        %v727 = vunpack.c.l.b16 %v524
        %v728 = vunpack.c.l.b16 %v525
        %v729 = vunpack.c.l.b16 %v526
        %v730 = vunpack.c.l.b16 %v527
        %v731 = vunpack.c.l.b16 %v528
        %v732 = vunpack.c.l.b16 %v529
        %v733 = vpack.c.b16 %v636, %v635
        %v734 = vpack.c.b16 %v638, %v637
        %v735 = vpack.c.b16 %v640, %v639
        %v736 = vpack.c.b16 %v642, %v641
        %v737 = vpack.c.b16 %v644, %v643
        %v738 = vpack.c.b16 %v646, %v645
        %v739 = vpack.c.b16 %v648, %v647
        %v740 = vpack.c.b16 %v650, %v649
        %v741 = vpack.c.b16 %v652, %v651
        %v742 = vpack.c.b16 %v654, %v653
        %v743 = vpack.c.b16 %v656, %v655
        %v744 = vpack.c.b16 %v658, %v657
        %v745 = vpack.c.b16 %v660, %v659
        %v746 = vpack.c.b16 %v662, %v661
        %v747 = vpack.c.b16 %v664, %v663
        %v748 = vpack.c.b16 %v666, %v665
        %v749 = vpack.c.b16 %v668, %v667
        %v750 = vpack.c.b16 %v670, %v669
        %v751 = vpack.c.b16 %v672, %v671
        %v752 = vpack.c.b16 %v674, %v673
        %v753 = vpack.c.b16 %v676, %v675
        %v754 = vpack.c.b16 %v678, %v677
        %v755 = vpack.c.b16 %v680, %v679
        %v756 = vpack.c.b16 %v682, %v681
        %v757 = vpack.c.b16 %v684, %v683
        %v758 = vpack.c.b16 %v686, %v685
        %v759 = vpack.c.b16 %v688, %v687
        %v760 = vpack.c.b16 %v690, %v689
        %v761 = vpack.c.b16 %v692, %v691
        %v762 = vpack.c.b16 %v694, %v693
        %v763 = vpack.c.b16 %v696, %v695
        %v764 = vpack.c.b16 %v698, %v697
        %v765 = vpack.c.b16 %v700, %v699
        %v766 = vpack.c.b16 %v702, %v701
        %v767 = vpack.c.b16 %v704, %v703
        %v768 = vpack.c.b16 %v706, %v705
        %v769 = vpack.c.b16 %v708, %v707
        %v770 = vpack.c.b16 %v710, %v709
        %v771 = vpack.c.b16 %v712, %v711
        %v772 = vpack.c.b16 %v714, %v713
        %v773 = vpack.c.b16 %v716, %v715
        %v774 = vpack.c.b16 %v718, %v717
        %v775 = vpack.c.b16 %v720, %v719
        %v776 = vpack.c.b16 %v722, %v721
        %v777 = vpack.c.b16 %v724, %v723
        %v778 = vpack.c.b16 %v726, %v725
        %v779 = vpack.c.b16 %v728, %v727
        %v780 = vpack.c.b16 %v730, %v729
        %v781 = vpack.c.b16 %v732, %v731
        %vm831 = vcmask 130048
        %v833 = vsel %vm831, %v389, 0
        %v836 = vsel %vm831, %v396, 0
        %v839 = vsel %vm831, %v403, 0
        %v842 = vsel %vm831, %v410, 0
        %v845 = vsel %vm831, %v417, 0
        %v848 = vsel %vm831, %v424, 0
        %v851 = vsel %vm831, %v431, 0
        %853 = vmatprep.subr.bf16.mxu0 0
        %854 = vmatpush1.bf16.msra.mxu0 %v733
        %855 = vmatprep.subr.bf16.mxu0 0
        %856 = vmatpush1.bf16.msra.mxu0 %v734
        %857 = vmatprep.subr.bf16.mxu0 0
        %858 = vmatpush1.bf16.msra.mxu0 %v735
        %859 = vmatprep.subr.bf16.mxu0 0
        %860 = vmatpush1.bf16.msra.mxu0 %v736
        %861 = vmatprep.subr.bf16.mxu0 0
        %862 = vmatpush1.bf16.msra.mxu0 %v737
        %863 = vmatprep.subr.bf16.mxu0 0
        %864 = vmatpush1.bf16.msra.mxu0 %v738
        %865 = vmatprep.subr.bf16.mxu0 0
        %866 = vmatpush1.bf16.msra.mxu0 %v739
        %867 = vmatprep.subr.bf16.mxu0 0
        %868 = vmatpush1.bf16.msra.mxu0 %v740
        %869 = vmatprep.subr.bf16.mxu0 0
        %870 = vmatpush1.bf16.msra.mxu0 %v741
        %871 = vmatprep.subr.bf16.mxu0 0
        %872 = vmatpush1.bf16.msra.mxu0 %v742
        %873 = vmatprep.subr.bf16.mxu0 0
        %874 = vmatpush1.bf16.msra.mxu0 %v743
        %875 = vmatprep.subr.bf16.mxu0 0
        %876 = vmatpush1.bf16.msra.mxu0 %v744
        %877 = vmatprep.subr.bf16.mxu0 0
        %878 = vmatpush1.bf16.msra.mxu0 %v745
        %879 = vmatprep.subr.bf16.mxu0 0
        %880 = vmatpush1.bf16.msra.mxu0 %v746
        %881 = vmatprep.subr.bf16.mxu0 0
        %882 = vmatpush1.bf16.msra.mxu0 %v747
        %883 = vmatprep.subr.bf16.mxu0 0
        %884 = vmatpush1.bf16.msra.mxu0 %v748
        %885 = vmatprep.mubr.bf16.mxu0 %v384
        %886 = vmatmul.mubr.bf16.gmra.mrb[0].mxu0 %v383
        %v887 = vpop.f32.mrb[0].mxu0
        %v888 = vadd.f32 %v535, %v887
        %v889 = vpop.f32.mrb[0].mxu0
        %v890 = vpop.f32.mrb[0].mxu0
        %v891 = vadd.f32 %v535, %v890
        %v892 = vpop.f32.mrb[0].mxu0
        %893 = vmatprep.mubr.bf16.mxu0 %v391
        %894 = vmatmul.mubr.bf16.gmra.mrb[0].mxu0 %v390
        %v895 = vpop.f32.mrb[0].mxu0
        %v896 = vadd.f32 %v535, %v895
        %v897 = vpop.f32.mrb[0].mxu0
        %v898 = vpop.f32.mrb[0].mxu0
        %v899 = vadd.f32 %v535, %v898
        %v900 = vpop.f32.mrb[0].mxu0
        %901 = vmatprep.mubr.bf16.mxu0 %v398
        %902 = vmatmul.mubr.bf16.gmra.mrb[0].mxu0 %v397
        %v903 = vpop.f32.mrb[0].mxu0
        %v904 = vadd.f32 %v535, %v903
        %v905 = vpop.f32.mrb[0].mxu0
        %v906 = vpop.f32.mrb[0].mxu0
        %v907 = vadd.f32 %v535, %v906
        %v908 = vpop.f32.mrb[0].mxu0
        %909 = vmatprep.mubr.bf16.mxu0 %v405
        %910 = vmatmul.mubr.bf16.gmra.mrb[0].mxu0 %v404
        %v911 = vpop.f32.mrb[0].mxu0
        %v912 = vadd.f32 %v535, %v911
        %v913 = vpop.f32.mrb[0].mxu0
        %v914 = vpop.f32.mrb[0].mxu0
        %v915 = vadd.f32 %v535, %v914
        %v916 = vpop.f32.mrb[0].mxu0
        %917 = vmatprep.mubr.bf16.mxu0 %v412
        %918 = vmatmul.mubr.bf16.gmra.mrb[0].mxu0 %v411
        %v919 = vpop.f32.mrb[0].mxu0
        %v920 = vadd.f32 %v535, %v919
        %v921 = vpop.f32.mrb[0].mxu0
        %v922 = vpop.f32.mrb[0].mxu0
        %v923 = vadd.f32 %v535, %v922
        %v924 = vpop.f32.mrb[0].mxu0
        %925 = vmatprep.mubr.bf16.mxu0 %v419
        %926 = vmatmul.mubr.bf16.gmra.mrb[0].mxu0 %v418
        %v927 = vpop.f32.mrb[0].mxu0
        %v928 = vadd.f32 %v535, %v927
        %v929 = vpop.f32.mrb[0].mxu0
        %v930 = vpop.f32.mrb[0].mxu0
        %v931 = vadd.f32 %v535, %v930
        %v932 = vpop.f32.mrb[0].mxu0
        %933 = vmatprep.mubr.bf16.mxu0 %v426
        %934 = vmatmul.mubr.bf16.gmra.mrb[0].mxu0 %v425
        %v935 = vpop.f32.mrb[0].mxu0
        %v936 = vadd.f32 %v535, %v935
        %v937 = vpop.f32.mrb[0].mxu0
        %v938 = vpop.f32.mrb[0].mxu0
        %v939 = vpop.f32.mrb[0].mxu0
        %940 = vdwg.mxu0
        %941 = vmatprep.subr.bf16.mxu0 0
        %942 = vmatpush1.bf16.msra.mxu0 %v749
        %943 = vmatprep.subr.bf16.mxu0 0
        %944 = vmatpush1.bf16.msra.mxu0 %v750
        %945 = vmatprep.subr.bf16.mxu0 0
        %946 = vmatpush1.bf16.msra.mxu0 %v751
        %947 = vmatprep.subr.bf16.mxu0 0
        %948 = vmatpush1.bf16.msra.mxu0 %v752
        %949 = vmatprep.subr.bf16.mxu0 0
        %950 = vmatpush1.bf16.msra.mxu0 %v753
        %951 = vmatprep.subr.bf16.mxu0 0
        %952 = vmatpush1.bf16.msra.mxu0 %v754
        %953 = vmatprep.subr.bf16.mxu0 0
        %954 = vmatpush1.bf16.msra.mxu0 %v755
        %955 = vmatprep.subr.bf16.mxu0 0
        %956 = vmatpush1.bf16.msra.mxu0 %v756
        %957 = vmatprep.subr.bf16.mxu0 0
        %958 = vmatpush1.bf16.msra.mxu0 %v757
        %959 = vmatprep.subr.bf16.mxu0 0
        %960 = vmatpush1.bf16.msra.mxu0 %v758
        %961 = vmatprep.subr.bf16.mxu0 0
        %962 = vmatpush1.bf16.msra.mxu0 %v759
        %963 = vmatprep.subr.bf16.mxu0 0
        %964 = vmatpush1.bf16.msra.mxu0 %v760
        %965 = vmatprep.subr.bf16.mxu0 0
        %966 = vmatpush1.bf16.msra.mxu0 %v761
        %967 = vmatprep.subr.bf16.mxu0 0
        %968 = vmatpush1.bf16.msra.mxu0 %v762
        %969 = vmatprep.subr.bf16.mxu0 0
        %970 = vmatpush1.bf16.msra.mxu0 %v763
        %971 = vmatprep.subr.bf16.mxu0 0
        %972 = vmatpush1.bf16.msra.mxu0 %v764
        %973 = vmatprep.mubr.bf16.mxu0 %v386
        %974 = vmatmul.mubr.bf16.gmra.mrb[0].mxu0 %v385
        %v975 = vpop.f32.mrb[0].mxu0
        %v976 = vadd.f32 %v888, %v975
        %v977 = vpop.f32.mrb[0].mxu0
        %v978 = vpop.f32.mrb[0].mxu0
        %v979 = vadd.f32 %v891, %v978
        %v980 = vpop.f32.mrb[0].mxu0
        %981 = vmatprep.mubr.bf16.mxu0 %v393
        %982 = vmatmul.mubr.bf16.gmra.mrb[0].mxu0 %v392
        %v983 = vpop.f32.mrb[0].mxu0
        %v984 = vadd.f32 %v896, %v983
        %v985 = vpop.f32.mrb[0].mxu0
        %v986 = vpop.f32.mrb[0].mxu0
        %v987 = vadd.f32 %v899, %v986
        %v988 = vpop.f32.mrb[0].mxu0
        %989 = vmatprep.mubr.bf16.mxu0 %v400
        %990 = vmatmul.mubr.bf16.gmra.mrb[0].mxu0 %v399
        %v991 = vpop.f32.mrb[0].mxu0
        %v992 = vadd.f32 %v904, %v991
        %v993 = vpop.f32.mrb[0].mxu0
        %v994 = vpop.f32.mrb[0].mxu0
        %v995 = vadd.f32 %v907, %v994
        %v996 = vpop.f32.mrb[0].mxu0
        %997 = vmatprep.mubr.bf16.mxu0 %v407
        %998 = vmatmul.mubr.bf16.gmra.mrb[0].mxu0 %v406
        %v999 = vpop.f32.mrb[0].mxu0
        %v1000 = vadd.f32 %v912, %v999
        %v1001 = vpop.f32.mrb[0].mxu0
        %v1002 = vpop.f32.mrb[0].mxu0
        %v1003 = vadd.f32 %v915, %v1002
        %v1004 = vpop.f32.mrb[0].mxu0
        %1005 = vmatprep.mubr.bf16.mxu0 %v414
        %1006 = vmatmul.mubr.bf16.gmra.mrb[0].mxu0 %v413
        %v1007 = vpop.f32.mrb[0].mxu0
        %v1008 = vadd.f32 %v920, %v1007
        %v1009 = vpop.f32.mrb[0].mxu0
        %v1010 = vpop.f32.mrb[0].mxu0
        %v1011 = vadd.f32 %v923, %v1010
        %v1012 = vpop.f32.mrb[0].mxu0
        %1013 = vmatprep.mubr.bf16.mxu0 %v421
        %1014 = vmatmul.mubr.bf16.gmra.mrb[0].mxu0 %v420
        %v1015 = vpop.f32.mrb[0].mxu0
        %v1016 = vadd.f32 %v928, %v1015
        %v1017 = vpop.f32.mrb[0].mxu0
        %v1018 = vpop.f32.mrb[0].mxu0
        %v1019 = vadd.f32 %v931, %v1018
        %v1020 = vpop.f32.mrb[0].mxu0
        %1021 = vmatprep.mubr.bf16.mxu0 %v428
        %1022 = vmatmul.mubr.bf16.gmra.mrb[0].mxu0 %v427
        %v1023 = vpop.f32.mrb[0].mxu0
        %v1024 = vadd.f32 %v936, %v1023
        %v1025 = vpop.f32.mrb[0].mxu0
        %v1026 = vpop.f32.mrb[0].mxu0
        %v1027 = vpop.f32.mrb[0].mxu0
        %1028 = vdwg.mxu0
        %1029 = vmatprep.subr.bf16.mxu0 0
        %1030 = vmatpush1.bf16.msra.mxu0 %v765
        %1031 = vmatprep.subr.bf16.mxu0 0
        %1032 = vmatpush1.bf16.msra.mxu0 %v766
        %1033 = vmatprep.subr.bf16.mxu0 0
        %1034 = vmatpush1.bf16.msra.mxu0 %v767
        %1035 = vmatprep.subr.bf16.mxu0 0
        %1036 = vmatpush1.bf16.msra.mxu0 %v768
        %1037 = vmatprep.subr.bf16.mxu0 0
        %1038 = vmatpush1.bf16.msra.mxu0 %v769
        %1039 = vmatprep.subr.bf16.mxu0 0
        %1040 = vmatpush1.bf16.msra.mxu0 %v770
        %1041 = vmatprep.subr.bf16.mxu0 0
        %1042 = vmatpush1.bf16.msra.mxu0 %v771
        %1043 = vmatprep.subr.bf16.mxu0 0
        %1044 = vmatpush1.bf16.msra.mxu0 %v772
        %1045 = vmatprep.subr.bf16.mxu0 0
        %1046 = vmatpush1.bf16.msra.mxu0 %v773
        %1047 = vmatprep.subr.bf16.mxu0 0
        %1048 = vmatpush1.bf16.msra.mxu0 %v774
        %1049 = vmatprep.subr.bf16.mxu0 0
        %1050 = vmatpush1.bf16.msra.mxu0 %v775
        %1051 = vmatprep.subr.bf16.mxu0 0
        %1052 = vmatpush1.bf16.msra.mxu0 %v776
        %1053 = vmatprep.subr.bf16.mxu0 0
        %1054 = vmatpush1.bf16.msra.mxu0 %v777
        %1055 = vmatprep.subr.bf16.mxu0 0
        %1056 = vmatpush1.bf16.msra.mxu0 %v778
        %1057 = vmatprep.subr.bf16.mxu0 0
        %1058 = vmatpush1.bf16.msra.mxu0 %v779
        %1059 = vmatprep.subr.bf16.mxu0 0
        %1060 = vmatpush1.bf16.msra.mxu0 %v780
        %1061 = vmatprep.mubr.bf16.mxu0 %v388
        %1062 = vmatmul.mubr.bf16.gmra.mrb[0].mxu0 %v387
        %v1063 = vpop.f32.mrb[0].mxu0
        %v1064 = vadd.f32 %v976, %v1063
        %v1065 = vpop.f32.mrb[0].mxu0
        %v1066 = vpop.f32.mrb[0].mxu0
        %v1067 = vadd.f32 %v979, %v1066
        %v1068 = vpop.f32.mrb[0].mxu0
        %1069 = vmatprep.mubr.bf16.mxu0 %v395
        %1070 = vmatmul.mubr.bf16.gmra.mrb[0].mxu0 %v394
        %v1071 = vpop.f32.mrb[0].mxu0
        %v1072 = vadd.f32 %v984, %v1071
        %v1073 = vpop.f32.mrb[0].mxu0
        %v1074 = vpop.f32.mrb[0].mxu0
        %v1075 = vadd.f32 %v987, %v1074
        %v1076 = vpop.f32.mrb[0].mxu0
        %1077 = vmatprep.mubr.bf16.mxu0 %v402
        %1078 = vmatmul.mubr.bf16.gmra.mrb[0].mxu0 %v401
        %v1079 = vpop.f32.mrb[0].mxu0
        %v1080 = vadd.f32 %v992, %v1079
        %v1081 = vpop.f32.mrb[0].mxu0
        %v1082 = vpop.f32.mrb[0].mxu0
        %v1083 = vadd.f32 %v995, %v1082
        %v1084 = vpop.f32.mrb[0].mxu0
        %1085 = vmatprep.mubr.bf16.mxu0 %v409
        %1086 = vmatmul.mubr.bf16.gmra.mrb[0].mxu0 %v408
        %v1087 = vpop.f32.mrb[0].mxu0
        %v1088 = vadd.f32 %v1000, %v1087
        %v1089 = vpop.f32.mrb[0].mxu0
        %v1090 = vpop.f32.mrb[0].mxu0
        %v1091 = vadd.f32 %v1003, %v1090
        %v1092 = vpop.f32.mrb[0].mxu0
        %1093 = vmatprep.mubr.bf16.mxu0 %v416
        %1094 = vmatmul.mubr.bf16.gmra.mrb[0].mxu0 %v415
        %v1095 = vpop.f32.mrb[0].mxu0
        %v1096 = vadd.f32 %v1008, %v1095
        %v1097 = vpop.f32.mrb[0].mxu0
        %v1098 = vpop.f32.mrb[0].mxu0
        %v1099 = vadd.f32 %v1011, %v1098
        %v1100 = vpop.f32.mrb[0].mxu0
        %1101 = vmatprep.mubr.bf16.mxu0 %v423
        %1102 = vmatmul.mubr.bf16.gmra.mrb[0].mxu0 %v422
        %v1103 = vpop.f32.mrb[0].mxu0
        %v1104 = vadd.f32 %v1016, %v1103
        %v1105 = vpop.f32.mrb[0].mxu0
        %v1106 = vpop.f32.mrb[0].mxu0
        %v1107 = vadd.f32 %v1019, %v1106
        %v1108 = vpop.f32.mrb[0].mxu0
        %1109 = vmatprep.mubr.bf16.mxu0 %v430
        %1110 = vmatmul.mubr.bf16.gmra.mrb[0].mxu0 %v429
        %v1111 = vpop.f32.mrb[0].mxu0
        %v1112 = vadd.f32 %v1024, %v1111
        %v1113 = vpop.f32.mrb[0].mxu0
        %v1114 = vpop.f32.mrb[0].mxu0
        %v1115 = vpop.f32.mrb[0].mxu0
        %1116 = vdwg.mxu0
        %1117 = vmatprep.subr.bf16.mxu0 0
        %1118 = vmatpush1.bf16.msra.mxu0 %v781
        %1119 = vmatprep.subr.bf16.mxu0 0
        %1120 = vmatpush1.bf16.msra.mxu0 0
        %1121 = vmatprep.subr.bf16.mxu0 0
        %1122 = vmatpush1.bf16.msra.mxu0 0
        %1123 = vmatprep.subr.bf16.mxu0 0
        %1124 = vmatpush1.bf16.msra.mxu0 0
        %1125 = vmatprep.subr.bf16.mxu0 0
        %1126 = vmatpush1.bf16.msra.mxu0 0
        %1127 = vmatprep.subr.bf16.mxu0 0
        %1128 = vmatpush1.bf16.msra.mxu0 0
        %1129 = vmatprep.subr.bf16.mxu0 0
        %1130 = vmatpush1.bf16.msra.mxu0 0
        %1131 = vmatprep.subr.bf16.mxu0 0
        %1132 = vmatpush1.bf16.msra.mxu0 0
        %1133 = vmatprep.subr.bf16.mxu0 0
        %1134 = vmatpush1.bf16.msra.mxu0 0
        %1135 = vmatprep.subr.bf16.mxu0 0
        %1136 = vmatpush1.bf16.msra.mxu0 0
        %1137 = vmatprep.subr.bf16.mxu0 0
        %1138 = vmatpush1.bf16.msra.mxu0 0
        %1139 = vmatprep.subr.bf16.mxu0 0
        %1140 = vmatpush1.bf16.msra.mxu0 0
        %1141 = vmatprep.subr.bf16.mxu0 0
        %1142 = vmatpush1.bf16.msra.mxu0 0
        %1143 = vmatprep.subr.bf16.mxu0 0
        %1144 = vmatpush1.bf16.msra.mxu0 0
        %1145 = vmatprep.subr.bf16.mxu0 0
        %1146 = vmatpush1.bf16.msra.mxu0 0
        %1147 = vmatprep.subr.bf16.mxu0 0
        %1148 = vmatpush1.bf16.msra.mxu0 0
        %1149 = vmatprep.mubr.bf16.mxu0 0
        %1150 = vmatmul.mubr.bf16.gmra.mrb[0].mxu0 %v833
        %v1151 = vpop.f32.mrb[0].mxu0
        %v1152 = vadd.f32 %v1064, %v1151
        %v1153 = vpop.f32.mrb[0].mxu0
        %v1154 = vpop.f32.mrb[0].mxu0
        %v1155 = vadd.f32 %v1067, %v1154
        %v1156 = vpop.f32.mrb[0].mxu0
        %1157 = vmatprep.mubr.bf16.mxu0 0
        %1158 = vmatmul.mubr.bf16.gmra.mrb[0].mxu0 %v836
        %v1159 = vpop.f32.mrb[0].mxu0
        %v1160 = vadd.f32 %v1072, %v1159
        %v1161 = vpop.f32.mrb[0].mxu0
        %v1162 = vpop.f32.mrb[0].mxu0
        %v1163 = vadd.f32 %v1075, %v1162
        %v1164 = vpop.f32.mrb[0].mxu0
        %1165 = vmatprep.mubr.bf16.mxu0 0
        %1166 = vmatmul.mubr.bf16.gmra.mrb[0].mxu0 %v839
        %v1167 = vpop.f32.mrb[0].mxu0
        %v1168 = vadd.f32 %v1080, %v1167
        %v1169 = vpop.f32.mrb[0].mxu0
        %v1170 = vpop.f32.mrb[0].mxu0
        %v1171 = vadd.f32 %v1083, %v1170
        %v1172 = vpop.f32.mrb[0].mxu0
        %1173 = vmatprep.mubr.bf16.mxu0 0
        %1174 = vmatmul.mubr.bf16.gmra.mrb[0].mxu0 %v842
        %v1175 = vpop.f32.mrb[0].mxu0
        %v1176 = vadd.f32 %v1088, %v1175
        %v1177 = vpop.f32.mrb[0].mxu0
        %v1178 = vpop.f32.mrb[0].mxu0
        %v1179 = vadd.f32 %v1091, %v1178
        %v1180 = vpop.f32.mrb[0].mxu0
        %1181 = vmatprep.mubr.bf16.mxu0 0
        %1182 = vmatmul.mubr.bf16.gmra.mrb[0].mxu0 %v845
        %v1183 = vpop.f32.mrb[0].mxu0
        %v1184 = vadd.f32 %v1096, %v1183
        %v1185 = vpop.f32.mrb[0].mxu0
        %v1186 = vpop.f32.mrb[0].mxu0
        %v1187 = vadd.f32 %v1099, %v1186
        %v1188 = vpop.f32.mrb[0].mxu0
        %1189 = vmatprep.mubr.bf16.mxu0 0
        %1190 = vmatmul.mubr.bf16.gmra.mrb[0].mxu0 %v848
        %v1191 = vpop.f32.mrb[0].mxu0
        %v1192 = vadd.f32 %v1104, %v1191
        %v1193 = vpop.f32.mrb[0].mxu0
        %v1194 = vpop.f32.mrb[0].mxu0
        %v1195 = vadd.f32 %v1107, %v1194
        %v1196 = vpop.f32.mrb[0].mxu0
        %1197 = vmatprep.mubr.bf16.mxu0 0
        %1198 = vmatmul.mubr.bf16.gmra.mrb[0].mxu0 %v851
        %v1199 = vpop.f32.mrb[0].mxu0
        %v1200 = vadd.f32 %v1112, %v1199
        %v1201 = vpop.f32.mrb[0].mxu0
        %v1202 = vpop.f32.mrb[0].mxu0
        %v1203 = vpop.f32.mrb[0].mxu0
        %1204 = vdwg.mxu0
        %v1205 = vmax.f32 %v1152, 0.0
        %v1206 = vmax.f32 %v1155, 0.0
        %v1207 = vmax.f32 %v1160, 0.0
        %v1208 = vmax.f32 %v1163, 0.0
        %v1209 = vmax.f32 %v1168, 0.0
        %v1210 = vmax.f32 %v1171, 0.0
        %v1211 = vmax.f32 %v1176, 0.0
        %v1212 = vmax.f32 %v1179, 0.0
        %v1213 = vmax.f32 %v1184, 0.0
        %v1214 = vmax.f32 %v1187, 0.0
        %v1215 = vmax.f32 %v1192, 0.0
        %v1216 = vmax.f32 %v1195, 0.0
        %v1217 = vmax.f32 %v1200, 0.0
        %v1218 = vpack.c.bf16 %v1206, %v1205
        %v1219 = vpack.c.bf16 %v1208, %v1207
        %v1220 = vpack.c.bf16 %v1210, %v1209
        %v1221 = vpack.c.bf16 %v1212, %v1211
        %v1222 = vpack.c.bf16 %v1214, %v1213
        %v1223 = vpack.c.bf16 %v1216, %v1215
        %v1224 = vpack.c.bf16 %v1217, %v1217
        %v1225 = vld [vmem:[#allocation7] sm:$0xf]
        %v1226 = vld [vmem:[#allocation7 + $0x4] sm:$0xf]
        %v1227 = vld [vmem:[#allocation7 + $0x8] sm:$0xf]
        %v1228 = vld [vmem:[#allocation7 + $0xc] sm:$0xf]
        %v1229 = vld [vmem:[#allocation7 + $0x10] sm:$0xf]
        %v1230 = vld [vmem:[#allocation7 + $0x14] sm:$0xf]
        %v1231 = vld [vmem:[#allocation7 + $0x18] sm:$0xf]
        %v1232 = vld [vmem:[#allocation7 + $0x1c] sm:$0xf]
        %v1233 = vld [vmem:[#allocation7 + $0x20] sm:$0xf]
        %v1234 = vld [vmem:[#allocation7 + $0x24] sm:$0xf]
        %v1235 = vld [vmem:[#allocation7 + $0x28] sm:$0xf]
        %v1236 = vld [vmem:[#allocation7 + $0x2c] sm:$0xf]
        %v1237 = vld [vmem:[#allocation7 + $0x30] sm:$0xf]
        %v1238 = vld [vmem:[#allocation7 + $0x34] sm:$0xf]
        %v1239 = vld [vmem:[#allocation7 + $0x38] sm:$0xf]
        %v1240 = vld [vmem:[#allocation7 + $0x3c] sm:$0xf]
        %v1241 = vld [vmem:[%s4] sm:$0x1]
        %v1243 = vlaneseq
        %v1244 = vshrl.u32 %v1243, 7
        %v1245 = vsub.s32 0, %v1244
        %v1246 = vrot.slane %v1241, %v1245
        %v1264 = vunpack.c.l.b16 %v1225
        %v1265 = vunpack.c.l.b16 %v1226
        %v1266 = vunpack.c.l.b16 %v1227
        %v1267 = vunpack.c.l.b16 %v1228
        %v1268 = vunpack.c.l.b16 %v1229
        %v1269 = vunpack.c.l.b16 %v1230
        %v1270 = vunpack.c.l.b16 %v1231
        %v1271 = vunpack.c.l.b16 %v1232
        %v1272 = vunpack.c.l.b16 %v1233
        %v1273 = vunpack.c.l.b16 %v1234
        %v1274 = vunpack.c.l.b16 %v1235
        %v1275 = vunpack.c.l.b16 %v1236
        %v1276 = vunpack.c.l.b16 %v1237
        %v1277 = vunpack.c.l.b16 %v1238
        %v1278 = vunpack.c.l.b16 %v1239
        %v1279 = vunpack.c.l.b16 %v1240
        %v1280 = vpack.c.b16 %v1265, %v1264
        %v1281 = vpack.c.b16 %v1267, %v1266
        %v1282 = vpack.c.b16 %v1269, %v1268
        %v1283 = vpack.c.b16 %v1271, %v1270
        %v1284 = vpack.c.b16 %v1273, %v1272
        %v1285 = vpack.c.b16 %v1275, %v1274
        %v1286 = vpack.c.b16 %v1277, %v1276
        %v1287 = vpack.c.b16 %v1279, %v1278
        %1296 = vmatprep.subr.bf16.mxu0 0
        %1297 = vmatpush1.bf16.msra.mxu0 %v1280
        %1298 = vmatprep.subr.bf16.mxu0 0
        %1299 = vmatpush1.bf16.msra.mxu0 %v1281
        %1300 = vmatprep.subr.bf16.mxu0 0
        %1301 = vmatpush1.bf16.msra.mxu0 %v1282
        %1302 = vmatprep.subr.bf16.mxu0 0
        %1303 = vmatpush1.bf16.msra.mxu0 %v1283
        %1304 = vmatprep.subr.bf16.mxu0 0
        %1305 = vmatpush1.bf16.msra.mxu0 %v1284
        %1306 = vmatprep.subr.bf16.mxu0 0
        %1307 = vmatpush1.bf16.msra.mxu0 %v1285
        %1308 = vmatprep.subr.bf16.mxu0 0
        %1309 = vmatpush1.bf16.msra.mxu0 %v1286
        %1310 = vmatprep.subr.bf16.mxu0 0
        %1311 = vmatpush1.bf16.msra.mxu0 %v1287
        %1312 = vmatprep.subr.bf16.mxu0 0
        %1313 = vmatpush1.bf16.msra.mxu0 0
        %1314 = vmatprep.subr.bf16.mxu0 0
        %1315 = vmatpush1.bf16.msra.mxu0 0
        %1316 = vmatprep.subr.bf16.mxu0 0
        %1317 = vmatpush1.bf16.msra.mxu0 0
        %1318 = vmatprep.subr.bf16.mxu0 0
        %1319 = vmatpush1.bf16.msra.mxu0 0
        %1320 = vmatprep.subr.bf16.mxu0 0
        %1321 = vmatpush1.bf16.msra.mxu0 0
        %1322 = vmatprep.subr.bf16.mxu0 0
        %1323 = vmatpush1.bf16.msra.mxu0 0
        %1324 = vmatprep.subr.bf16.mxu0 0
        %1325 = vmatpush1.bf16.msra.mxu0 0
        %1326 = vmatprep.subr.bf16.mxu0 0
        %1327 = vmatpush1.bf16.msra.mxu0 0
        %1328 = vmatprep.mubr.bf16.mxu0 0
        %1329 = vmatmul.mubr.bf16.gmra.mrb[0].mxu0 %v1218
        %v1330 = vpop.f32.mrb[0].mxu0
        %v1331 = vadd.f32 %v1246, %v1330
        %v1332 = vpop.f32.mrb[0].mxu0
        %v1333 = vpop.f32.mrb[0].mxu0
        %v1334 = vadd.f32 %v1246, %v1333
        %v1335 = vpop.f32.mrb[0].mxu0
        %1336 = vmatprep.mubr.bf16.mxu0 0
        %1337 = vmatmul.mubr.bf16.gmra.mrb[0].mxu0 %v1219
        %v1338 = vpop.f32.mrb[0].mxu0
        %v1339 = vadd.f32 %v1246, %v1338
        %v1340 = vpop.f32.mrb[0].mxu0
        %v1341 = vpop.f32.mrb[0].mxu0
        %v1342 = vadd.f32 %v1246, %v1341
        %v1343 = vpop.f32.mrb[0].mxu0
        %1344 = vmatprep.mubr.bf16.mxu0 0
        %1345 = vmatmul.mubr.bf16.gmra.mrb[0].mxu0 %v1220
        %v1346 = vpop.f32.mrb[0].mxu0
        %v1347 = vadd.f32 %v1246, %v1346
        %v1348 = vpop.f32.mrb[0].mxu0
        %v1349 = vpop.f32.mrb[0].mxu0
        %v1350 = vadd.f32 %v1246, %v1349
        %v1351 = vpop.f32.mrb[0].mxu0
        %1352 = vmatprep.mubr.bf16.mxu0 0
        %1353 = vmatmul.mubr.bf16.gmra.mrb[0].mxu0 %v1221
        %v1354 = vpop.f32.mrb[0].mxu0
        %v1355 = vadd.f32 %v1246, %v1354
        %v1356 = vpop.f32.mrb[0].mxu0
        %v1357 = vpop.f32.mrb[0].mxu0
        %v1358 = vadd.f32 %v1246, %v1357
        %v1359 = vpop.f32.mrb[0].mxu0
        %1360 = vmatprep.mubr.bf16.mxu0 0
        %1361 = vmatmul.mubr.bf16.gmra.mrb[0].mxu0 %v1222
        %v1362 = vpop.f32.mrb[0].mxu0
        %v1363 = vadd.f32 %v1246, %v1362
        %v1364 = vpop.f32.mrb[0].mxu0
        %v1365 = vpop.f32.mrb[0].mxu0
        %v1366 = vadd.f32 %v1246, %v1365
        %v1367 = vpop.f32.mrb[0].mxu0
        %1368 = vmatprep.mubr.bf16.mxu0 0
        %1369 = vmatmul.mubr.bf16.gmra.mrb[0].mxu0 %v1223
        %v1370 = vpop.f32.mrb[0].mxu0
        %v1371 = vadd.f32 %v1246, %v1370
        %v1372 = vpop.f32.mrb[0].mxu0
        %v1373 = vpop.f32.mrb[0].mxu0
        %v1374 = vadd.f32 %v1246, %v1373
        %v1375 = vpop.f32.mrb[0].mxu0
        %1376 = vmatprep.mubr.bf16.mxu0 0
        %1377 = vmatmul.mubr.bf16.gmra.mrb[0].mxu0 %v1224
        %v1378 = vpop.f32.mrb[0].mxu0
        %v1379 = vadd.f32 %v1246, %v1378
        %v1380 = vpop.f32.mrb[0].mxu0
        %v1381 = vpop.f32.mrb[0].mxu0
        %v1382 = vpop.f32.mrb[0].mxu0
        %1383 = vdwg.mxu0
        %v1384 = vpack.c.bf16 %v1334, %v1331
        %v1385 = vpack.c.bf16 %v1342, %v1339
        %v1386 = vpack.c.bf16 %v1350, %v1347
        %v1387 = vpack.c.bf16 %v1358, %v1355
        %v1388 = vpack.c.bf16 %v1366, %v1363
        %v1389 = vpack.c.bf16 %v1374, %v1371
        %v1390 = vpack.c.bf16 %v1379, %v1379
        %v1398 = vunpack.c.l.b16 %v1384
        %v1399 = vunpack.c.h.b16 %v1384
        %v1400 = vunpack.c.l.b16 %v1385
        %v1401 = vunpack.c.h.b16 %v1385
        %v1402 = vunpack.c.l.b16 %v1386
        %v1403 = vunpack.c.h.b16 %v1386
        %v1404 = vunpack.c.l.b16 %v1387
        %v1405 = vunpack.c.h.b16 %v1387
        %v1406 = vunpack.c.l.b16 %v1388
        %v1407 = vunpack.c.h.b16 %v1388
        %v1408 = vunpack.c.l.b16 %v1389
        %v1409 = vunpack.c.h.b16 %v1389
        %v1410 = vunpack.c.l.b16 %v1390
        %v1411 = vpack.c.b16 %v1398, %v1398
        %v1412 = vpack.c.b16 %v1399, %v1399
        %v1413 = vpack.c.b16 %v1400, %v1400
        %v1414 = vpack.c.b16 %v1401, %v1401
        %v1415 = vpack.c.b16 %v1402, %v1402
        %v1416 = vpack.c.b16 %v1403, %v1403
        %v1417 = vpack.c.b16 %v1404, %v1404
        %v1418 = vpack.c.b16 %v1405, %v1405
        %v1419 = vpack.c.b16 %v1406, %v1406
        %v1420 = vpack.c.b16 %v1407, %v1407
        %v1421 = vpack.c.b16 %v1408, %v1408
        %v1422 = vpack.c.b16 %v1409, %v1409
        %v1423 = vpack.c.b16 %v1410, %v1410
        %1437 = vst [vmem:[%s279] sm:$0xf] %v1411
        %1438 = vst [vmem:[%s279 + $0x4] sm:$0xf] %v1412
        %1439 = vst [vmem:[%s279 + $0x8] sm:$0xf] %v1413
        %1440 = vst [vmem:[%s279 + $0xc] sm:$0xf] %v1414
        %1441 = vst [vmem:[%s279 + $0x10] sm:$0xf] %v1415
        %1442 = vst [vmem:[%s279 + $0x14] sm:$0xf] %v1416
        %1443 = vst [vmem:[%s279 + $0x18] sm:$0xf] %v1417
        %1444 = vst [vmem:[%s279 + $0x1c] sm:$0xf] %v1418
        %1445 = vst [vmem:[%s279 + $0x20] sm:$0xf] %v1419
        %1446 = vst [vmem:[%s279 + $0x24] sm:$0xf] %v1420
        %1447 = vst [vmem:[%s279 + $0x28] sm:$0xf] %v1421
        %1448 = vst [vmem:[%s279 + $0x2c] sm:$0xf] %v1422
        %1449 = vst [vmem:[%s279 + $0x30] sm:$0xf] %v1423
        %s1450 = sand.u32 %s141, 1
        %s1451 = scalar_lea.sflag [#allocation4], %s1450
        %s1452 = sand.u32 %s141, 1
        %s1453 = smul.addr %s1452, 52
        %s1454 = scalar_lea.vmem [#allocation8], %s1453
        // Predicated region
        $region53: #{tpu_custom_call.1} parent=39 // pred_check
          %p1455 = pneg %p151
        $region54: #{tpu_custom_call.1} parent=39 // pred_check_branch
          %1457 = sbr.rel (%p1455) target = $region56
        $region55: #{tpu_custom_call.1} parent=39 // pred_region
          %s1458 = smul.u32 13, %s23
          %s1459 = ssub.s32 25, %s1458
          %p1460 = scmp.lt.s32.totalorder %s1459, 13
          %s1461 = scalar_select %p1460, %s1459, 13
          %s1462 = smul.u32 64, %s1461
          %s1464 = ssub.s32 832, %s1462
          %1465 = vsyncadd %s1451, %s1464
          %p1466 = scmp.ne.s32.totalorder 0, %s1462
          %s1467 = smul.addr %s1458, 64
          %s1468 = scalar_lea.hbm %s5, %s1467
          %s1469 = smul.u32 4, %s1461
          %s1470 = sshll.u32 %s1454, 4
          %s1471 = int_to_ptr.vmem [resolvable:$true] %s1470
          %s1472 = sshll.u32 %s1469, 4
          %1476 = dma.vmem_to_hbm [thread:$0]  (%p1466), %s1471, %s1472, %s1468, %s1451, 64, 64, 4
        $region56: #{tpu_custom_call.1} parent=39 // pred_fallthru
          _
      $region40: #{tpu_custom_call.1} parent=5 // pred_fallthru
        _
      %p1477 = scmp.le.s32.totalorder 2, %s18
      // Predicated region
      $region57: #{tpu_custom_call.1} parent=5 // pred_check
        %p1478 = pneg %p1477
      $region58: #{tpu_custom_call.1} parent=5 // pred_check_branch
        %1480 = sbr.rel (%p1478) target = $region60
      $region59: #{tpu_custom_call.1} parent=5 // pred_region
        %s1481 = ssub.s32 %s18, 2
        // Predicated region
        $region61: #{tpu_custom_call.1} parent=59 // pred_check
          %p1482 = pneg %p157
        $region62: #{tpu_custom_call.1} parent=59 // pred_check_branch
          %1484 = sbr.rel (%p1482) target = $region64
        $region63: #{tpu_custom_call.1} parent=59 // pred_region
          %s1485 = sand.u32 %s142, 1
          %s1486 = scalar_lea.sflag [#allocation4], %s1485
          %s1487 = sand.u32 %s142, 1
          %s1488 = smul.addr %s1487, 52
          %s1489 = scalar_lea.vmem [#allocation8], %s1488
          %1490 = dma.done %s1486, 832
        $region64: #{tpu_custom_call.1} parent=59 // pred_fallthru
          _
      $region60: #{tpu_custom_call.1} parent=5 // pred_fallthru
        _
    $region6: #{tpu_custom_call.1} parent=1 // loop_footer
      %s22 = sadd.s32 1, %s18
    $region7: #{tpu_custom_call.1} parent=1 // loop_footer_branch
      %17 = sbr.rel target = $region3
    $region8: #{tpu_custom_call.1} parent=1 // loop_exit
      _
    %1491 = vsyncpa [#allocation3], 1
    %s1492 = scalar_lea.sflag [#allocation3], 1
    %1493 = vsyncpa %s1492, 1
    %1494 = vsyncpa [#allocation6], 1
    %1495 = vsyncpa [#allocation4], 1
    %s1496 = scalar_lea.sflag [#allocation4], 1
    %1497 = vsyncpa %s1496, 1

</llo_original>
